<compile_context>
chip_gen: v6e
topology: v6e:2x2x1
jax: 0.10.0
libtpu: 0.0.40
codegen_flags: <defaults>
</compile_context>

<pallas_src>
import jax
import jax.numpy as jnp
from jax.experimental import pallas as pl
from jax.experimental.pallas import tpu as pltpu


def _exp_kernel(x_ref, o_ref):
    # Compute in f32 (free: DMA-bound), cast back to the output dtype on store.
    o_ref[...] = jnp.exp(x_ref[...].astype(jnp.float32)).astype(o_ref.dtype)


def _vmem_budget():
    """Per-generation (vmem_limit_bytes, max_block_bytes)."""
    cap = None
    try:
        info = pltpu.get_tpu_info()
        cap = getattr(info, "vmem_capacity_bytes", None)
    except Exception:
        cap = None
    if cap is None or cap <= 64 * 1024 * 1024:
        # v7x-class (64 MiB physical VMEM per TC) or unknown: conservative
        # values that are safe on every generation.
        return 44 * 1024 * 1024, 8 * 1024 * 1024
    # v5e / v6e: 128 MiB physical VMEM -> bigger blocks, fewer grid steps.
    return 64 * 1024 * 1024, 12 * 1024 * 1024


def _exp_pallas_aligned(x_flat: jax.Array) -> jax.Array:
    """Exp over a flat float array whose size is a multiple of 128."""
    dtype = x_flat.dtype
    n = x_flat.size
    itemsize = jnp.dtype(dtype).itemsize
    # dtype-aware sublane packing: 8 rows (4B), 16 (2B), 32 (1B).
    sublane = max(8, 32 // max(1, itemsize))

    vmem_limit, max_block_bytes = _vmem_budget()

    # Widest lane-dense width that divides n exactly (no padding) AND leaves at
    # least one full sublane pack of rows, so blocks fill whole (8,128) vregs.
    width = None
    for w in (4096, 2048, 1024, 512, 256, 128):
        if n % w == 0 and n // w >= sublane:
            width = w
            break
    if width is None:
        for w in (4096, 2048, 1024, 512, 256, 128):
            if n % w == 0:
                width = w
                break
    m = n // width
    x2d = x_flat.reshape(m, width)
    row_bytes = width * itemsize

    if m <= sublane:
        # Tiny tensor: one full-extent block (escape hatch of the (8,128) rule).
        tm = m
    else:
        # Block count: keep each block under the per-generation byte budget AND
        # take >= 4 grid steps so the double-buffered pipeline overlaps DMA with
        # compute and dual-TC chips get >= 2 blocks per core. Prefer an even
        # count so the two TensorCores split evenly.
        min_steps = 4
        num_blocks = max(min_steps, pl.cdiv(m * row_bytes, max_block_bytes))
        if num_blocks % 2:
            num_blocks += 1
        tm = pl.cdiv(m, num_blocks)
        tm = pl.cdiv(tm, sublane) * sublane          # sublane-aligned rows
        tm = min(tm, (m // sublane) * sublane)       # stay within aligned m
        tm = max(tm, sublane)

    grid = (pl.cdiv(m, tm),)

    out2d = pl.pallas_call(
        _exp_kernel,
        out_shape=jax.ShapeDtypeStruct((m, width), dtype),
        grid_spec=pltpu.PrefetchScalarGridSpec(
            num_scalar_prefetch=0,
            grid=grid,
            in_specs=[pl.BlockSpec((tm, width), lambda i: (i, 0))],
            out_specs=pl.BlockSpec((tm, width), lambda i: (i, 0)),
        ),
        compiler_params=pltpu.CompilerParams(
            dimension_semantics=("parallel",),
            vmem_limit_bytes=vmem_limit,
        ),
        cost_estimate=pl.CostEstimate(
            flops=0,
            transcendentals=n,
            bytes_accessed=2 * n * itemsize,
        ),
    )(x2d)
    return out2d.reshape(-1)


def exp_pallas(x: jax.Array) -> jax.Array:
    """Elementwise exp matching torch.exp semantics (ints / bools -> float32)."""
    orig_shape = x.shape
    if not jnp.issubdtype(x.dtype, jnp.floating):
        # torch.exp on integer / bool tensors returns a floating tensor.
        x = x.astype(jnp.float32)
    n = x.size
    if n == 0:
        return x.reshape(orig_shape)

    x_flat = x.reshape(-1)
    n_main = (n // 128) * 128
    if n_main == 0:
        # Smaller than one lane vector: not worth a kernel launch.
        return jnp.exp(x_flat).reshape(orig_shape)

    if n_main == n:
        out_flat = _exp_pallas_aligned(x_flat)
    else:
        # Ragged tail (< 128 elems): kernel on the aligned prefix, plain exp on
        # the tail. Avoids the ~3x HBM traffic of pad + kernel + slice.
        main = _exp_pallas_aligned(x_flat[:n_main])
        tail = jnp.exp(x_flat[n_main:])
        out_flat = jnp.concatenate([main, tail])
    return out_flat.reshape(orig_shape)


if __name__ == "__main__":
    key = jax.random.PRNGKey(0)

    # Primary check: NCHW-style activation consistent with the module.
    x = jax.random.normal(key, (2, 4, 16, 16), dtype=jnp.float32)
    y = exp_pallas(x)
    jax.block_until_ready(y)
    y_ref = jnp.exp(x)
    assert y.shape == x.shape and y.dtype == x.dtype
    assert jnp.allclose(y, y_ref, rtol=1e-6, atol=1e-6)

    # Multi-block path (>= 4 grid steps, pipelined DMA).
    x2 = jax.random.normal(jax.random.PRNGKey(1), (4, 8, 64, 64), dtype=jnp.float32)
    y2 = exp_pallas(x2)
    jax.block_until_ready(y2)
    assert jnp.allclose(y2, jnp.exp(x2), rtol=1e-6, atol=1e-6)

    # Unaligned (n % 128 != 0) path: aligned prefix via kernel + tiny tail.
    x3 = jax.random.normal(jax.random.PRNGKey(2), (130, 3), dtype=jnp.float32)
    y3 = exp_pallas(x3)
    jax.block_until_ready(y3)
    assert jnp.allclose(y3, jnp.exp(x3), rtol=1e-6, atol=1e-6)

    # bf16 path (compute in f32 inside the kernel, cast on store).
    x4 = jax.random.normal(jax.random.PRNGKey(3), (8, 16, 32), dtype=jnp.bfloat16)
    y4 = exp_pallas(x4)
    jax.block_until_ready(y4)
    assert y4.dtype == jnp.bfloat16
    assert jnp.allclose(y4.astype(jnp.float32),
                        jnp.exp(x4.astype(jnp.float32)), rtol=2e-2, atol=2e-2)

    print("KERNEL_OK")
</pallas_src>

<mosaic_0001>
module attributes {stable_mosaic.version = 11 : i64} {
  func.func @_exp_kernel(%arg0: i32, %arg1: memref<8x256xf32, #tpu.memory_space<vmem>>, %arg2: memref<8x256xf32, #tpu.memory_space<vmem>>) attributes {dimension_semantics = [#tpu.dimension_semantics<parallel>], iteration_bounds = array<i64: 1>, scalar_prefetch = 0 : i64, scratch_operands = 0 : i64, tpu.core_type = #tpu.core_type<tc>, window_params = [{transform_indices = @transform_0, window_bounds = array<i64: 8, 256>}, {transform_indices = @transform_1, window_bounds = array<i64: 8, 256>}]} {
    %c0 = arith.constant 0 : index
    %c0_0 = arith.constant 0 : index
    %0 = vector.load %arg1[%c0, %c0_0] : memref<8x256xf32, #tpu.memory_space<vmem>>, vector<8x256xf32>
    %1 = math.exp %0 : vector<8x256xf32>
    %c0_1 = arith.constant 0 : index
    %c0_2 = arith.constant 0 : index
    %2 = vector.load %arg2[%c0_1, %c0_2] : memref<8x256xf32, #tpu.memory_space<vmem>>, vector<8x256xf32>
    tpu.vector_store %arg2[%c0_1, %c0_2], %1 {strides = array<i32>} : memref<8x256xf32, #tpu.memory_space<vmem>>, vector<8x256xf32>,
    return
  }
  func.func @transform_0(%arg0: i32) -> (i32, i32) {
    %c0_i32 = arith.constant 0 : i32
    %c0_i32_0 = arith.constant 0 : i32
    return %arg0, %c0_i32 : i32, i32
  }
  func.func @transform_1(%arg0: i32) -> (i32, i32) {
    %c0_i32 = arith.constant 0 : i32
    %c0_i32_0 = arith.constant 0 : i32
    return %arg0, %c0_i32 : i32, i32
  }
}

</mosaic_0001>

<llo_original>
// kernel: tpu_custom_call.1
$region0: #{tpu_custom_call.1}
  #allocation0 [shape = 'u32[]', space=smem, size = 0x4, offset = 0x4, fixed_abs, tag = 'smem constant byte address 0x4 - core index']
  #allocation1 [shape = 'u32[144,128]{1,0:T(1,128)}', space=vmem, size = 0x12000, scoped, tag = 'internal scratch']
  %s0 = inlined_call_operand.hbm [shape: f32[8,256], index: 0, kind: input, shape index: {}]
  %s1 = inlined_call_operand.hbm [shape: f32[8,256], index: 1, kind: output, shape index: {}]
  %s2 = sld [smem:[#allocation0]]
  $region18: #{tpu_custom_call.1} parent=0
    _
  %s4 = ssub.s32 1, %s2
  %s5 = scalar_select 0, %s4, %s2
  $region1: #{tpu_custom_call.1} parent=0
    #allocation2 [shape = 'u8[8192]{0}', space=vmem, size = 0x2000, scoped, tag = 'input window, operand 0, single buffered']
    #allocation3 [shape = 's32[1]{0}', space=sflag, size = 0x4, scoped, tag = 'scoped memory for tpu_custom_call.1']
    #allocation4 [shape = 's32[1]{0}', space=sflag, size = 0x4, scoped, tag = 'scoped memory for tpu_custom_call.1']
    #allocation5 [shape = 'u8[8192]{0}', space=vmem, size = 0x2000, scoped, tag = 'output window, operand 0, single buffered']
    %6 = vsyncpa [#allocation3], 0
    %7 = vsyncpa [#allocation4], 0
    // Predicated region
    $region2: #{tpu_custom_call.1} parent=1 // pred_check
      _
    $region3: #{tpu_custom_call.1} parent=1 // pred_check_branch
      %9 = sbr.rel (0) target = $region5
    $region4: #{tpu_custom_call.1} parent=1 // pred_region
      %s11 = ssub.s32 256, 256
      %12 = vsyncadd [#allocation3], %s11
      %s14 = sshll.u32 [#allocation2], 4
      %s15 = int_to_ptr.vmem [resolvable:$true] %s14
      %17 = dma.hbm_to_vmem [thread:$0]  %s0, 256, %s15, [#allocation3]
    $region5: #{tpu_custom_call.1} parent=1 // pred_fallthru
      _
    // Predicated region
    $region6: #{tpu_custom_call.1} parent=1 // pred_check
      _
    $region7: #{tpu_custom_call.1} parent=1 // pred_check_branch
      %19 = sbr.rel (0) target = $region9
    $region8: #{tpu_custom_call.1} parent=1 // pred_region
      %20 = dma.done [#allocation3], 256
    $region9: #{tpu_custom_call.1} parent=1 // pred_fallthru
      _
    %v21 = vld [vmem:[#allocation2] sm:$0xff]
    %v22 = vld [vmem:[#allocation2 + $0x8] sm:$0xff]
    %v23 = vmul.f32 %v21, 1.442695
    %v24 = vpow.pop %v23
    %v25 = vmul.f32 %v22, 1.442695
    %v26 = vpow.pop %v25
    %27 = vst [vmem:[#allocation5] sm:$0xff] %v24
    %28 = vst [vmem:[#allocation5 + $0x8] sm:$0xff] %v26
    // Predicated region
    $region10: #{tpu_custom_call.1} parent=1 // pred_check
      _
    $region11: #{tpu_custom_call.1} parent=1 // pred_check_branch
      %30 = sbr.rel (0) target = $region13
    $region12: #{tpu_custom_call.1} parent=1 // pred_region
      %s32 = ssub.s32 256, 256
      %33 = vsyncadd [#allocation4], %s32
      %s35 = sshll.u32 [#allocation5], 4
      %s36 = int_to_ptr.vmem [resolvable:$true] %s35
      %38 = dma.vmem_to_hbm [thread:$0]  %s36, 256, %s1, [#allocation4]
    $region13: #{tpu_custom_call.1} parent=1 // pred_fallthru
      _
    // Predicated region
    $region14: #{tpu_custom_call.1} parent=1 // pred_check
      _
    $region15: #{tpu_custom_call.1} parent=1 // pred_check_branch
      %40 = sbr.rel (0) target = $region17
    $region16: #{tpu_custom_call.1} parent=1 // pred_region
      %41 = dma.done [#allocation4], 256
    $region17: #{tpu_custom_call.1} parent=1 // pred_fallthru
      _
    %42 = vsyncpa [#allocation3], 1
    %43 = vsyncpa [#allocation4], 1

</llo_original>
